<compile_context>
chip_gen: v6e
topology: v6e:2x2x1
jax: 0.10.0
libtpu: 0.0.40
codegen_flags: <defaults>
</compile_context>

<pallas_src>
import inspect

import jax
import jax.numpy as jnp
from jax.experimental import pallas as pl
from jax.experimental.pallas import tpu as pltpu


def _round_up(n, m):
    return ((n + m - 1) // m) * m


def _detect_pipeline_mode():
    # Import-time feature check (replaces the old broad try/except fallback).
    if not hasattr(pl, "Buffered"):
        return False
    try:
        return "pipeline_mode" in inspect.signature(pl.BlockSpec).parameters
    except (TypeError, ValueError):
        return False


_HAS_PIPELINE_MODE = _detect_pipeline_mode()


def encoder_kernel(x_ref, w_ref, b_ref, o_ref):
    # x_ref: (tm, D_in) f32    w_ref: (D_in, tn) bf16 (or f32 for exact path)
    # b_ref: (1, tn)    f32    o_ref: (tm, tn)   out_dtype
    # Cast x to the weight dtype in VMEM (cheap VPU op) so the MXU gets bf16
    # operands without a separate wrapper-side cast kernel; accumulate in f32,
    # do bias + ReLU in f32, cast only at the final store.
    x = x_ref[...].astype(w_ref.dtype)
    acc = jnp.dot(x, w_ref[...], preferred_element_type=jnp.float32)
    o_ref[...] = jnp.maximum(acc + b_ref[...], 0.0).astype(o_ref.dtype)


def encoder_forward(x, w_t, b, *, tm=None, tn=None, out_dtype=jnp.bfloat16):
    """relu(x @ w_t + b) as one Pallas TPU kernel.

    x:   (B, D_in) float32
    w_t: (D_in, H) weight, pre-transposed from PyTorch's (H, D_in).  Its dtype
         selects the MXU precision: cast it to bf16 once at parameter init for
         the fast path, or keep f32 for an exact path.
    b:   (H,) bias.
    out_dtype: bf16 by default (halves writeback); jnp.float32 to match the
         PyTorch module's output dtype exactly.
    Returns (B, H) out_dtype.
    """
    B, D_in = x.shape
    H = w_t.shape[1]

    # Lane-dense H: pad weight/bias columns to a multiple of 128 only when
    # needed (extra columns are relu(0 + 0) = 0, trimmed at the end).
    Hp = _round_up(max(H, 128), 128)
    if Hp != H:
        w_t = jnp.pad(w_t, ((0, 0), (0, Hp - H)))
        b = jnp.pad(b, (0, Hp - H))

    # Row tile: fill the MXU (up to 256 rows), but keep >= 2 grid steps when
    # B > 256 so ("parallel", ...) can shard across v7x's two TensorCores.
    if tm is None:
        if B > 256:
            tm = min(_round_up(pl.cdiv(B, 2), 16), 256)
        else:
            tm = min(_round_up(B, 16), 256)
    tm = max(16, _round_up(tm, 16))  # multiple of 16: bf16 sublane packing

    # H tile: keep the whole weight resident while its block stays well under
    # the *scoped* VMEM budget (~16 MiB v5e / ~32 MiB v6e & v7x by default,
    # double-buffered x/out tiles also count); otherwise tile H.
    if tn is None:
        w_block_bytes = D_in * Hp * w_t.dtype.itemsize
        tn = Hp if w_block_bytes <= (8 << 20) else 256
    tn = min(_round_up(max(tn, 128), 128), Hp)

    grid_m = pl.cdiv(B, tm)   # ragged last batch block is masked by Pallas
    grid_h = pl.cdiv(Hp, tn)

    # Single-buffer weight/bias only when they truly are grid-invariant
    # (one H block) and the API supports it; saving is small but free.
    param_kw = {}
    if _HAS_PIPELINE_MODE and grid_h == 1:
        param_kw = dict(pipeline_mode=pl.Buffered(1))

    b2 = b.reshape(1, Hp).astype(jnp.float32)  # f32 epilogue bias

    out = pl.pallas_call(
        encoder_kernel,
        out_shape=jax.ShapeDtypeStruct((B, Hp), out_dtype),
        grid_spec=pltpu.PrefetchScalarGridSpec(
            num_scalar_prefetch=0,
            grid=(grid_m, grid_h),
            in_specs=[
                pl.BlockSpec((tm, D_in), lambda i, j: (i, 0)),
                pl.BlockSpec((D_in, tn), lambda i, j: (0, j), **param_kw),
                pl.BlockSpec((1, tn), lambda i, j: (0, j), **param_kw),
            ],
            out_specs=pl.BlockSpec((tm, tn), lambda i, j: (i, j)),
        ),
        compiler_params=pltpu.CompilerParams(
            dimension_semantics=("parallel", "parallel"),
        ),
    )(x, w_t, b2)

    return out if Hp == H else out[:, :H]


if __name__ == "__main__":
    # Small shapes consistent with Encoder(D_in, H).
    B, D_in, H = 16, 64, 128

    key = jax.random.PRNGKey(0)
    kx, kw, kb = jax.random.split(key, 3)

    x = jax.random.normal(kx, (B, D_in), dtype=jnp.float32)
    # PyTorch Linear stores weight as (H, D_in); kernel takes the transpose.
    bound = 1.0 / (D_in ** 0.5)
    w = jax.random.uniform(kw, (H, D_in), minval=-bound, maxval=bound,
                           dtype=jnp.float32)
    b = jax.random.uniform(kb, (H,), minval=-bound, maxval=bound,
                           dtype=jnp.float32)

    # Parameter-init-time cast (hoisted out of the hot path per the review).
    w_t_bf16 = w.T.astype(jnp.bfloat16)  # (D_in, H)

    out = jax.block_until_ready(encoder_forward(x, w_t_bf16, b))

    # References: exact-path (bf16 operands, f32 accum) and full-f32 module.
    # NOTE: bf16 MXU operands + bf16 output lose precision vs the PyTorch f32
    # Linear; pass an f32 weight and out_dtype=jnp.float32 for the exact path.
    ref_bf16 = jnp.maximum(
        jnp.dot(x.astype(jnp.bfloat16), w.T.astype(jnp.bfloat16),
                preferred_element_type=jnp.float32) + b, 0.0)
    ref_f32 = jnp.maximum(x @ w.T + b, 0.0)

    assert out.shape == (B, H)
    assert out.dtype == jnp.bfloat16
    o32 = out.astype(jnp.float32)
    assert jnp.allclose(o32, ref_bf16, atol=2e-2, rtol=2e-2), \
        "mismatch vs bf16-operand reference"
    assert jnp.allclose(o32, ref_f32, atol=5e-2, rtol=5e-2), \
        "mismatch vs f32 reference"

    print("KERNEL_OK")
</pallas_src>

<mosaic_0001>
module attributes {stable_mosaic.version = 11 : i64} {
  func.func @encoder_kernel(%arg0: i32, %arg1: i32, %arg2: memref<16x64xf32, #tpu.memory_space<vmem>>, %arg3: memref<64x128xbf16, #tpu.memory_space<vmem>>, %arg4: memref<1x128xf32, #tpu.memory_space<vmem>>, %arg5: memref<16x128xbf16, #tpu.memory_space<vmem>>) attributes {dimension_semantics = [#tpu.dimension_semantics<parallel>, #tpu.dimension_semantics<parallel>], iteration_bounds = array<i64: 1, 1>, scalar_prefetch = 0 : i64, scratch_operands = 0 : i64, tpu.core_type = #tpu.core_type<tc>, window_params = [{transform_indices = @transform_0, window_bounds = array<i64: 16, 64>}, {pipeline_mode = #tpu.pipeline_mode<synchronous>, transform_indices = @transform_1, window_bounds = array<i64: 64, 128>}, {pipeline_mode = #tpu.pipeline_mode<synchronous>, transform_indices = @transform_2, window_bounds = array<i64: 1, 128>}, {transform_indices = @transform_3, window_bounds = array<i64: 16, 128>}]} {
    %c0 = arith.constant 0 : index
    %c0_0 = arith.constant 0 : index
    %0 = vector.load %arg2[%c0, %c0_0] : memref<16x64xf32, #tpu.memory_space<vmem>>, vector<16x64xf32>
    %1 = arith.truncf %0 : vector<16x64xf32> to vector<16x64xbf16>
    %c0_1 = arith.constant 0 : index
    %c0_2 = arith.constant 0 : index
    %2 = vector.load %arg3[%c0_1, %c0_2] : memref<64x128xbf16, #tpu.memory_space<vmem>>, vector<64x128xbf16>
    %cst = arith.constant dense<0.000000e+00> : vector<16x128xf32>
    %3 = tpu.matmul %1, %2, %cst {dimension_numbers = #tpu.dot_dimension_numbers<[1], [0], [0], [1], [0, 0, 1, 1], [], []>} : vector<16x64xbf16>, vector<64x128xbf16>, vector<16x128xf32> -> vector<16x128xf32>
    %c0_3 = arith.constant 0 : index
    %c0_4 = arith.constant 0 : index
    %4 = vector.load %arg4[%c0_3, %c0_4] : memref<1x128xf32, #tpu.memory_space<vmem>>, vector<1x128xf32>
    %5 = vector.broadcast %4 : vector<1x128xf32> to vector<16x128xf32>
    %6 = arith.addf %3, %5 : vector<16x128xf32>
    %cst_5 = arith.constant 0.000000e+00 : f32
    %7 = vector.broadcast %cst_5 : f32 to vector<16x128xf32>
    %8 = arith.maximumf %6, %7 : vector<16x128xf32>
    %9 = arith.truncf %8 : vector<16x128xf32> to vector<16x128xbf16>
    %c0_6 = arith.constant 0 : index
    %c0_7 = arith.constant 0 : index
    %10 = vector.load %arg5[%c0_6, %c0_7] : memref<16x128xbf16, #tpu.memory_space<vmem>>, vector<16x128xbf16>
    tpu.vector_store %arg5[%c0_6, %c0_7], %9 {strides = array<i32>} : memref<16x128xbf16, #tpu.memory_space<vmem>>, vector<16x128xbf16>,
    return
  }
  func.func @transform_0(%arg0: i32, %arg1: i32) -> (i32, i32) {
    %c0_i32 = arith.constant 0 : i32
    %c0_i32_0 = arith.constant 0 : i32
    return %arg0, %c0_i32 : i32, i32
  }
  func.func @transform_1(%arg0: i32, %arg1: i32) -> (i32, i32) {
    %c0_i32 = arith.constant 0 : i32
    %c0_i32_0 = arith.constant 0 : i32
    return %c0_i32, %arg1 : i32, i32
  }
  func.func @transform_2(%arg0: i32, %arg1: i32) -> (i32, i32) {
    %c0_i32 = arith.constant 0 : i32
    %c0_i32_0 = arith.constant 0 : i32
    return %c0_i32, %arg1 : i32, i32
  }
  func.func @transform_3(%arg0: i32, %arg1: i32) -> (i32, i32) {
    %c0_i32 = arith.constant 0 : i32
    return %arg0, %arg1 : i32, i32
  }
}

</mosaic_0001>

<llo_original>
// kernel: tpu_custom_call.1
$region0: #{tpu_custom_call.1}
  #allocation0 [shape = 'u32[]', space=smem, size = 0x4, offset = 0x4, fixed_abs, tag = 'smem constant byte address 0x4 - core index']
  #allocation1 [shape = 'u32[144,128]{1,0:T(1,128)}', space=vmem, size = 0x12000, scoped, tag = 'internal scratch']
  %s0 = inlined_call_operand.hbm [shape: f32[16,64], index: 0, kind: input, shape index: {}]
  %s1 = inlined_call_operand.hbm [shape: bf16[64,128], index: 1, kind: input, shape index: {}]
  %s2 = inlined_call_operand.vmem [shape: f32[1,128], index: 2, kind: input, shape index: {}]
  %s3 = inlined_call_operand.hbm [shape: bf16[16,128], index: 3, kind: output, shape index: {}]
  %s4 = sld [smem:[#allocation0]]
  $region30: #{tpu_custom_call.1} parent=0
    _
  %s6 = ssub.s32 1, %s4
  %s7 = scalar_select 0, %s6, %s4
  $region1: #{tpu_custom_call.1} parent=0
    #allocation2 [shape = 'u8[8192]{0}', space=vmem, size = 0x2000, scoped, tag = 'input window, operand 0, single buffered']
    #allocation3 [shape = 's32[1]{0}', space=sflag, size = 0x4, scoped, tag = 'scoped memory for tpu_custom_call.1']
    #allocation4 [shape = 's32[1]{0}', space=sflag, size = 0x4, scoped, tag = 'scoped memory for tpu_custom_call.1']
    #allocation5 [shape = 'u8[16384]{0}', space=vmem, size = 0x4000, scoped, tag = 'input window, operand 1, single buffered']
    #allocation6 [shape = 's32[1]{0}', space=sflag, size = 0x4, scoped, tag = 'scoped memory for tpu_custom_call.1']
    #allocation7 [shape = 'u8[4096]{0}', space=vmem, size = 0x1000, scoped, tag = 'output window, operand 0, single buffered']
    %8 = vsyncpa [#allocation3], 0
    %9 = vsyncpa [#allocation6], 0
    %10 = vsyncpa [#allocation4], 0
    // Predicated region
    $region2: #{tpu_custom_call.1} parent=1 // pred_check
      _
    $region3: #{tpu_custom_call.1} parent=1 // pred_check_branch
      %12 = sbr.rel (0) target = $region5
    $region4: #{tpu_custom_call.1} parent=1 // pred_region
      %s14 = ssub.s32 256, 256
      %15 = vsyncadd [#allocation3], %s14
      %s16 = sshll.u32 [#allocation2], 4
      %s17 = int_to_ptr.vmem [resolvable:$true] %s16
      %22 = dma.hbm_to_vmem [thread:$0]  %s0, 256, %s17, [#allocation3], 128, 128, 8
    $region5: #{tpu_custom_call.1} parent=1 // pred_fallthru
      _
    // Predicated region
    $region6: #{tpu_custom_call.1} parent=1 // pred_check
      _
    $region7: #{tpu_custom_call.1} parent=1 // pred_check_branch
      %24 = sbr.rel (0) target = $region9
    $region8: #{tpu_custom_call.1} parent=1 // pred_region
      %s26 = ssub.s32 512, 512
      %27 = vsyncadd [#allocation6], %s26
      %s28 = sshll.u32 [#allocation5], 4
      %s29 = int_to_ptr.vmem [resolvable:$true] %s28
      %34 = dma.hbm_to_vmem [thread:$0]  %s1, 512, %s29, [#allocation6], 64, 64, 4
    $region9: #{tpu_custom_call.1} parent=1 // pred_fallthru
      _
    // Predicated region
    $region10: #{tpu_custom_call.1} parent=1 // pred_check
      _
    $region11: #{tpu_custom_call.1} parent=1 // pred_check_branch
      %36 = sbr.rel (0) target = $region13
    $region12: #{tpu_custom_call.1} parent=1 // pred_region
      _
    $region13: #{tpu_custom_call.1} parent=1 // pred_fallthru
      _
    // Predicated region
    $region14: #{tpu_custom_call.1} parent=1 // pred_check
      _
    $region15: #{tpu_custom_call.1} parent=1 // pred_check_branch
      %38 = sbr.rel (0) target = $region17
    $region16: #{tpu_custom_call.1} parent=1 // pred_region
      %39 = dma.done [#allocation3], 256
    $region17: #{tpu_custom_call.1} parent=1 // pred_fallthru
      _
    // Predicated region
    $region18: #{tpu_custom_call.1} parent=1 // pred_check
      _
    $region19: #{tpu_custom_call.1} parent=1 // pred_check_branch
      %41 = sbr.rel (0) target = $region21
    $region20: #{tpu_custom_call.1} parent=1 // pred_region
      %42 = dma.done [#allocation6], 512
    $region21: #{tpu_custom_call.1} parent=1 // pred_fallthru
      _
    %v44 = vld [vmem:[#allocation2] sm:$0xff]
    %v45 = vld [vmem:[#allocation2 + $0x8] sm:$0xff]
    %v46 = vpack.c.bf16 %v45, %v44
    %v47 = vld [vmem:[#allocation5] sm:$0xf]
    %v48 = vld [vmem:[#allocation5 + $0x4] sm:$0xf]
    %v49 = vld [vmem:[#allocation5 + $0x8] sm:$0xf]
    %v50 = vld [vmem:[#allocation5 + $0xc] sm:$0xf]
    %v51 = vld [vmem:[#allocation5 + $0x10] sm:$0xf]
    %v52 = vld [vmem:[#allocation5 + $0x14] sm:$0xf]
    %v53 = vld [vmem:[#allocation5 + $0x18] sm:$0xf]
    %v54 = vld [vmem:[#allocation5 + $0x1c] sm:$0xf]
    %v55 = vld [vmem:[%s2] sm:$0x1]
    %v57 = vlaneseq
    %v58 = vshrl.u32 %v57, 7
    %v59 = vsub.s32 0, %v58
    %v60 = vrot.slane %v55, %v59
    %v70 = vunpack.c.l.b16 %v47
    %v71 = vunpack.c.l.b16 %v48
    %v72 = vunpack.c.l.b16 %v49
    %v73 = vunpack.c.l.b16 %v50
    %v74 = vunpack.c.l.b16 %v51
    %v75 = vunpack.c.l.b16 %v52
    %v76 = vunpack.c.l.b16 %v53
    %v77 = vunpack.c.l.b16 %v54
    %v78 = vpack.c.b16 %v71, %v70
    %v79 = vpack.c.b16 %v73, %v72
    %v80 = vpack.c.b16 %v75, %v74
    %v81 = vpack.c.b16 %v77, %v76
    %vm86 = vcmask 523264
    %v88 = vsel %vm86, %v46, 0
    %90 = vmatprep.subr.bf16.mxu0 0
    %91 = vmatpush1.bf16.msra.mxu0 0
    %92 = vmatprep.subr.bf16.mxu0 0
    %93 = vmatpush1.bf16.msra.mxu0 0
    %94 = vmatprep.subr.bf16.mxu0 0
    %95 = vmatpush1.bf16.msra.mxu0 0
    %96 = vmatprep.subr.bf16.mxu0 0
    %97 = vmatpush1.bf16.msra.mxu0 0
    %98 = vmatprep.subr.bf16.mxu0 0
    %99 = vmatpush1.bf16.msra.mxu0 %v81
    %100 = vmatprep.subr.bf16.mxu0 0
    %101 = vmatpush1.bf16.msra.mxu0 %v80
    %102 = vmatprep.subr.bf16.mxu0 0
    %103 = vmatpush1.bf16.msra.mxu0 %v79
    %104 = vmatprep.subr.bf16.mxu0 0
    %105 = vmatpush1.bf16.msra.mxu0 %v78
    %106 = vmatprep.subr.bf16.mxu0 0
    %107 = vmatpush2.bf16.msra.mxu0 0
    %108 = vmatprep.subr.bf16.mxu0 0
    %109 = vmatpush2.bf16.msra.mxu0 0
    %110 = vmatprep.subr.bf16.mxu0 0
    %111 = vmatpush2.bf16.msra.mxu0 0
    %112 = vmatprep.subr.bf16.mxu0 0
    %113 = vmatpush2.bf16.msra.mxu0 0
    %114 = vmatprep.subr.bf16.mxu0 0
    %115 = vmatpush2.bf16.msra.mxu0 0
    %116 = vmatprep.subr.bf16.mxu0 0
    %117 = vmatpush2.bf16.msra.mxu0 0
    %118 = vmatprep.subr.bf16.mxu0 0
    %119 = vmatpush2.bf16.msra.mxu0 0
    %120 = vmatprep.subr.bf16.mxu0 0
    %121 = vmatpush2.bf16.msra.mxu0 0
    %122 = vmatprep.mubr.bf16.mxu0 0
    %123 = vmatmul.mubr.bf16.gmra.mxu0 %v88
    %v124 = vpop.f32.mrf.mxu0
    %v125 = vadd.f32 %v60, %v124
    %v126 = vpop.f32.mrf.mxu0
    %v127 = vpop.f32.mrf.mxu0
    %v128 = vadd.f32 %v60, %v127
    %v129 = vpop.f32.mrf.mxu0
    %130 = vdwg.mxu0
    %v131 = vmax.f32 %v125, 0.0
    %v132 = vmax.f32 %v128, 0.0
    %v133 = vpack.c.bf16 %v132, %v131
    %v135 = vunpack.c.l.b16 %v133
    %v136 = vunpack.c.h.b16 %v133
    %v137 = vpack.c.b16 %v135, %v135
    %v138 = vpack.c.b16 %v136, %v136
    %141 = vst [vmem:[#allocation7] sm:$0xf] %v137
    %142 = vst [vmem:[#allocation7 + $0x4] sm:$0xf] %v138
    // Predicated region
    $region22: #{tpu_custom_call.1} parent=1 // pred_check
      _
    $region23: #{tpu_custom_call.1} parent=1 // pred_check_branch
      %144 = sbr.rel (0) target = $region25
    $region24: #{tpu_custom_call.1} parent=1 // pred_region
      %s146 = ssub.s32 128, 128
      %147 = vsyncadd [#allocation4], %s146
      %s148 = sshll.u32 [#allocation7], 4
      %s149 = int_to_ptr.vmem [resolvable:$true] %s148
      %154 = dma.vmem_to_hbm [thread:$0]  %s149, 128, %s3, [#allocation4], 64, 64, 4
    $region25: #{tpu_custom_call.1} parent=1 // pred_fallthru
      _
    // Predicated region
    $region26: #{tpu_custom_call.1} parent=1 // pred_check
      _
    $region27: #{tpu_custom_call.1} parent=1 // pred_check_branch
      %156 = sbr.rel (0) target = $region29
    $region28: #{tpu_custom_call.1} parent=1 // pred_region
      %157 = dma.done [#allocation4], 128
    $region29: #{tpu_custom_call.1} parent=1 // pred_fallthru
      _
    %158 = vsyncpa [#allocation3], 1
    %159 = vsyncpa [#allocation6], 1
    %160 = vsyncpa [#allocation4], 1

</llo_original>
